<compile_context>
chip_gen: v7x
topology: tpu7x:2x2x1
jax: 0.10.0
libtpu: 0.0.40
codegen_flags: <defaults>
</compile_context>

<pallas_src>
import jax
import jax.numpy as jnp
from jax.experimental import pallas as pl
from jax.experimental.pallas import tpu as pltpu

_LANE = 128
_SUBLANE = 8


def _round_up(n, m):
    return ((n + m - 1) // m) * m


def _decoder_kernel(z_ref,
                    w1_ref, b1_ref,
                    w2_ref, b2_ref,
                    w3_ref, b3_ref,
                    w4_ref, b4_ref,
                    out_ref):
    """Fused 4-layer MLP forward for one batch tile (everything in VMEM).

    MXU inputs are in the weights' dtype (bf16 or f32); accumulation, bias add
    and ReLU happen in f32 on the VPU. The unnormalize affine (if any) is
    pre-folded into w4/b4 wrapper-side.
    """
    cdt = w1_ref.dtype  # compute dtype fed to the MXU

    x = z_ref[...].astype(cdt)  # in-kernel cast (cheap VPU op, hidden under MXU)

    h = jnp.dot(x, w1_ref[...], preferred_element_type=jnp.float32) + b1_ref[...]
    h = jnp.maximum(h, 0.0)

    h = jnp.dot(h.astype(cdt), w2_ref[...],
                preferred_element_type=jnp.float32) + b2_ref[...]
    h = jnp.maximum(h, 0.0)

    h = jnp.dot(h.astype(cdt), w3_ref[...],
                preferred_element_type=jnp.float32) + b3_ref[...]
    h = jnp.maximum(h, 0.0)

    y = jnp.dot(h.astype(cdt), w4_ref[...],
                preferred_element_type=jnp.float32) + b4_ref[...]

    out_ref[...] = y.astype(out_ref.dtype)


def prepare_decoder_params(params, *, unnormalize=False, mean=0.0, std=1.0,
                           use_bf16=True):
    """One-time padding / casting / unnormalize-folding of the constant params.

    Hidden widths are zero-padded to 128 lanes (lane-dense activations); the
    latent input K and the data_dim output N stay at their natural sizes so no
    padded bytes ever cross HBM for activations. Call once and reuse the
    result with decoder_apply() for repeated inference.
    """
    w = [params["w1"], params["w2"], params["w3"], params["w4"]]
    b = [jnp.asarray(params[f"b{i + 1}"], jnp.float32).reshape(1, -1)
         for i in range(4)]

    latent_dim = int(w[0].shape[0])
    d1, d2, d3 = int(w[0].shape[1]), int(w[1].shape[1]), int(w[2].shape[1])
    data_dim = int(w[3].shape[1])
    d1p, d2p, d3p = (_round_up(d, _LANE) for d in (d1, d2, d3))

    cdt = jnp.bfloat16 if use_bf16 else jnp.float32

    w1 = jnp.asarray(w[0], jnp.float32)
    w2 = jnp.asarray(w[1], jnp.float32)
    w3 = jnp.asarray(w[2], jnp.float32)
    w4 = jnp.asarray(w[3], jnp.float32)
    b4 = b[3]

    if unnormalize:
        # Decoder._normalize: x * std + mean  -> folded into the last Linear
        # (done in f32 BEFORE any bf16 cast to preserve the fast-path accuracy).
        mean_v = jnp.broadcast_to(
            jnp.asarray(mean, jnp.float32).reshape(-1), (data_dim,))
        std_v = jnp.broadcast_to(
            jnp.asarray(std, jnp.float32).reshape(-1), (data_dim,))
        w4 = w4 * std_v[None, :]
        b4 = b4 * std_v[None, :] + mean_v[None, :]

    w1p = jnp.pad(w1, ((0, 0), (0, d1p - d1))).astype(cdt)
    b1p = jnp.pad(b[0], ((0, 0), (0, d1p - d1)))
    w2p = jnp.pad(w2, ((0, d1p - d1), (0, d2p - d2))).astype(cdt)
    b2p = jnp.pad(b[1], ((0, 0), (0, d2p - d2)))
    w3p = jnp.pad(w3, ((0, d2p - d2), (0, d3p - d3))).astype(cdt)
    b3p = jnp.pad(b[2], ((0, 0), (0, d3p - d3)))
    w4p = jnp.pad(w4, ((0, d3p - d3), (0, 0))).astype(cdt)
    b4p = b4  # (1, data_dim) f32, unpadded

    return {
        "latent_dim": latent_dim,
        "data_dim": data_dim,
        "padded_dims": (latent_dim, d1p, d2p, d3p, data_dim),
        "use_bf16": bool(use_bf16),
        "tensors": (w1p, b1p, w2p, b2p, w3p, b3p, w4p, b4p),
    }


def decoder_apply(z, prepared, *, batch_tile=1024):
    """Runs the fused decoder kernel using prepared (padded/cast) params."""
    B, latent_dim = z.shape
    assert latent_dim == prepared["latent_dim"], "latent_dim mismatch"
    Kd, d1p, d2p, d3p, Nd = prepared["padded_dims"]
    tensors = prepared["tensors"]

    # ---- balanced batch tiling ------------------------------------------------
    # granularity 16 for bf16 (native packed sublane tile), 8 for f32
    gran = 16 if prepared["use_bf16"] else _SUBLANE
    Bg = _round_up(max(B, 1), gran)
    num_tiles = pl.cdiv(Bg, batch_tile)
    if Bg >= 2 * gran:
        num_tiles = max(num_tiles, 2)   # let both v7x TensorCores get work
    tile = _round_up(pl.cdiv(Bg, num_tiles), gran)
    num_tiles = pl.cdiv(Bg, tile)
    Bp = tile * num_tiles

    z = jnp.asarray(z, jnp.float32)
    z_p = z if Bp == B else jnp.pad(z, ((0, Bp - B), (0, 0)))  # rows only

    def full(a):
        return pl.BlockSpec(tuple(a.shape), lambda i: (0, 0))

    flops = 2 * Bp * (Kd * d1p + d1p * d2p + d2p * d3p + d3p * Nd)
    bytes_accessed = (Bp * Kd * 4 + Bp * Nd * 4
                      + sum(int(t.size) * t.dtype.itemsize for t in tensors))

    out = pl.pallas_call(
        _decoder_kernel,
        out_shape=jax.ShapeDtypeStruct((Bp, Nd), jnp.float32),
        grid_spec=pltpu.PrefetchScalarGridSpec(
            num_scalar_prefetch=0,
            grid=(num_tiles,),
            in_specs=[pl.BlockSpec((tile, Kd), lambda i: (i, 0))]
                     + [full(t) for t in tensors],
            out_specs=pl.BlockSpec((tile, Nd), lambda i: (i, 0)),
        ),
        compiler_params=pltpu.CompilerParams(
            dimension_semantics=("parallel",),
            vmem_limit_bytes=32 * 1024 * 1024),
        cost_estimate=pl.CostEstimate(flops=flops, transcendentals=0,
                                      bytes_accessed=bytes_accessed),
    )(z_p, *tensors)

    return out if Bp == B else out[:B]


def decoder_forward(z, params, *, unnormalize=False, mean=0.0, std=1.0,
                    use_bf16=True, batch_tile=1024):
    """One-shot convenience wrapper (prepare + apply)."""
    prepared = prepare_decoder_params(params, unnormalize=unnormalize,
                                      mean=mean, std=std, use_bf16=use_bf16)
    return decoder_apply(z, prepared, batch_tile=batch_tile)


def init_decoder_params(key, latent_dim, data_dim, layer_widths=(64, 128, 256)):
    """Deterministic synthetic initialization (PyTorch-Linear-style uniform).

    Weights are stored as (in_features, out_features)."""
    dims = [latent_dim, *layer_widths, data_dim]
    params = {}
    for li in range(4):
        fan_in, fan_out = dims[li], dims[li + 1]
        key, kw, kb = jax.random.split(key, 3)
        bound = 1.0 / jnp.sqrt(fan_in)
        params[f"w{li+1}"] = jax.random.uniform(
            kw, (fan_in, fan_out), jnp.float32, -bound, bound)
        params[f"b{li+1}"] = jax.random.uniform(
            kb, (1, fan_out), jnp.float32, -bound, bound)
    return params


def decoder_forward_ref(z, params, *, unnormalize=False, mean=0.0, std=1.0):
    """Pure-JAX f32 reference for correctness checking."""
    h = jnp.maximum(z @ params["w1"] + params["b1"], 0.0)
    h = jnp.maximum(h @ params["w2"] + params["b2"], 0.0)
    h = jnp.maximum(h @ params["w3"] + params["b3"], 0.0)
    y = h @ params["w4"] + params["b4"]
    if unnormalize:
        y = y * jnp.asarray(std) + jnp.asarray(mean)
    return y


if __name__ == "__main__":
    key = jax.random.PRNGKey(0)
    k_param, k_z, k_m, k_s = jax.random.split(key, 4)

    latent_dim = 16
    data_dim = 32
    batch = 10  # deliberately not a multiple of the tile -> exercises padding

    params = init_decoder_params(k_param, latent_dim, data_dim)
    z = jax.random.normal(k_z, (batch, latent_dim), jnp.float32)

    # per-feature normalization stats (scalars also supported)
    mean = jax.random.normal(k_m, (data_dim,), jnp.float32)
    std = 1.0 + 0.1 * jax.random.normal(k_s, (data_dim,), jnp.float32)

    ref = decoder_forward_ref(z, params)

    # exact-precision path (f32 MXU inputs) -- tight check vs reference
    xhat_f32 = jax.block_until_ready(decoder_forward(z, params, use_bf16=False))
    assert xhat_f32.shape == (batch, data_dim)
    assert jnp.allclose(xhat_f32, ref, atol=1e-5, rtol=1e-5)

    # production fast path (bf16 MXU inputs, f32 accumulate), prepared params
    # hoisted once and reused across calls -- loose check
    prepared = prepare_decoder_params(params, use_bf16=True)
    xhat = jax.block_until_ready(decoder_apply(z, prepared))
    assert jnp.allclose(xhat, ref, atol=3e-2, rtol=3e-2)
    xhat2 = jax.block_until_ready(decoder_apply(z, prepared))   # reuse, no re-pad
    assert jnp.allclose(xhat2, xhat)

    # unnormalize=True folded into the last layer (per-feature mean/std)
    xhat_un = jax.block_until_ready(
        decoder_forward(z, params, unnormalize=True, mean=mean, std=std,
                        use_bf16=False))
    ref_un = decoder_forward_ref(z, params, unnormalize=True, mean=mean, std=std)
    assert jnp.allclose(xhat_un, ref_un, atol=1e-5, rtol=1e-5)

    # scalar mean/std also supported
    xhat_sc = jax.block_until_ready(
        decoder_forward(z, params, unnormalize=True, mean=0.5, std=2.0,
                        use_bf16=False))
    ref_sc = decoder_forward_ref(z, params, unnormalize=True, mean=0.5, std=2.0)
    assert jnp.allclose(xhat_sc, ref_sc, atol=1e-5, rtol=1e-5)

    print("KERNEL_OK")
</pallas_src>

<mosaic_0001>
module attributes {stable_mosaic.version = 11 : i64} {
  func.func @_decoder_kernel(%arg0: i32, %arg1: memref<8x16xf32, #tpu.memory_space<vmem>>, %arg2: memref<16x128xf32, #tpu.memory_space<vmem>>, %arg3: memref<1x128xf32, #tpu.memory_space<vmem>>, %arg4: memref<128x128xf32, #tpu.memory_space<vmem>>, %arg5: memref<1x128xf32, #tpu.memory_space<vmem>>, %arg6: memref<128x256xf32, #tpu.memory_space<vmem>>, %arg7: memref<1x256xf32, #tpu.memory_space<vmem>>, %arg8: memref<256x32xf32, #tpu.memory_space<vmem>>, %arg9: memref<1x32xf32, #tpu.memory_space<vmem>>, %arg10: memref<8x32xf32, #tpu.memory_space<vmem>>) attributes {dimension_semantics = [#tpu.dimension_semantics<parallel>], iteration_bounds = array<i64: 2>, scalar_prefetch = 0 : i64, scratch_operands = 0 : i64, tpu.core_type = #tpu.core_type<tc>, window_params = [{transform_indices = @transform_0, window_bounds = array<i64: 8, 16>}, {pipeline_mode = #tpu.pipeline_mode<synchronous>, transform_indices = @transform_1, window_bounds = array<i64: 16, 128>}, {pipeline_mode = #tpu.pipeline_mode<synchronous>, transform_indices = @transform_2, window_bounds = array<i64: 1, 128>}, {pipeline_mode = #tpu.pipeline_mode<synchronous>, transform_indices = @transform_3, window_bounds = array<i64: 128, 128>}, {pipeline_mode = #tpu.pipeline_mode<synchronous>, transform_indices = @transform_4, window_bounds = array<i64: 1, 128>}, {pipeline_mode = #tpu.pipeline_mode<synchronous>, transform_indices = @transform_5, window_bounds = array<i64: 128, 256>}, {pipeline_mode = #tpu.pipeline_mode<synchronous>, transform_indices = @transform_6, window_bounds = array<i64: 1, 256>}, {pipeline_mode = #tpu.pipeline_mode<synchronous>, transform_indices = @transform_7, window_bounds = array<i64: 256, 32>}, {pipeline_mode = #tpu.pipeline_mode<synchronous>, transform_indices = @transform_8, window_bounds = array<i64: 1, 32>}, {transform_indices = @transform_9, window_bounds = array<i64: 8, 32>}]} {
    %c0 = arith.constant 0 : index
    %c0_0 = arith.constant 0 : index
    %0 = vector.load %arg1[%c0, %c0_0] : memref<8x16xf32, #tpu.memory_space<vmem>>, vector<8x16xf32>
    %c0_1 = arith.constant 0 : index
    %c0_2 = arith.constant 0 : index
    %1 = vector.load %arg2[%c0_1, %c0_2] : memref<16x128xf32, #tpu.memory_space<vmem>>, vector<16x128xf32>
    %cst = arith.constant dense<0.000000e+00> : vector<8x128xf32>
    %2 = tpu.matmul %0, %1, %cst {dimension_numbers = #tpu.dot_dimension_numbers<[1], [0], [0], [1], [0, 0, 1, 1], [], []>} : vector<8x16xf32>, vector<16x128xf32>, vector<8x128xf32> -> vector<8x128xf32>
    %c0_3 = arith.constant 0 : index
    %c0_4 = arith.constant 0 : index
    %3 = vector.load %arg3[%c0_3, %c0_4] : memref<1x128xf32, #tpu.memory_space<vmem>>, vector<1x128xf32>
    %4 = vector.broadcast %3 : vector<1x128xf32> to vector<8x128xf32>
    %5 = arith.addf %2, %4 : vector<8x128xf32>
    %cst_5 = arith.constant 0.000000e+00 : f32
    %6 = vector.broadcast %cst_5 : f32 to vector<8x128xf32>
    %7 = arith.maximumf %5, %6 : vector<8x128xf32>
    %c0_6 = arith.constant 0 : index
    %c0_7 = arith.constant 0 : index
    %8 = vector.load %arg4[%c0_6, %c0_7] : memref<128x128xf32, #tpu.memory_space<vmem>>, vector<128x128xf32>
    %cst_8 = arith.constant dense<0.000000e+00> : vector<8x128xf32>
    %9 = tpu.matmul %7, %8, %cst_8 {dimension_numbers = #tpu.dot_dimension_numbers<[1], [0], [0], [1], [0, 0, 1, 1], [], []>} : vector<8x128xf32>, vector<128x128xf32>, vector<8x128xf32> -> vector<8x128xf32>
    %c0_9 = arith.constant 0 : index
    %c0_10 = arith.constant 0 : index
    %10 = vector.load %arg5[%c0_9, %c0_10] : memref<1x128xf32, #tpu.memory_space<vmem>>, vector<1x128xf32>
    %11 = vector.broadcast %10 : vector<1x128xf32> to vector<8x128xf32>
    %12 = arith.addf %9, %11 : vector<8x128xf32>
    %cst_11 = arith.constant 0.000000e+00 : f32
    %13 = vector.broadcast %cst_11 : f32 to vector<8x128xf32>
    %14 = arith.maximumf %12, %13 : vector<8x128xf32>
    %c0_12 = arith.constant 0 : index
    %c0_13 = arith.constant 0 : index
    %15 = vector.load %arg6[%c0_12, %c0_13] : memref<128x256xf32, #tpu.memory_space<vmem>>, vector<128x256xf32>
    %cst_14 = arith.constant dense<0.000000e+00> : vector<8x256xf32>
    %16 = tpu.matmul %14, %15, %cst_14 {dimension_numbers = #tpu.dot_dimension_numbers<[1], [0], [0], [1], [0, 0, 1, 1], [], []>} : vector<8x128xf32>, vector<128x256xf32>, vector<8x256xf32> -> vector<8x256xf32>
    %c0_15 = arith.constant 0 : index
    %c0_16 = arith.constant 0 : index
    %17 = vector.load %arg7[%c0_15, %c0_16] : memref<1x256xf32, #tpu.memory_space<vmem>>, vector<1x256xf32>
    %18 = vector.broadcast %17 : vector<1x256xf32> to vector<8x256xf32>
    %19 = arith.addf %16, %18 : vector<8x256xf32>
    %cst_17 = arith.constant 0.000000e+00 : f32
    %20 = vector.broadcast %cst_17 : f32 to vector<8x256xf32>
    %21 = arith.maximumf %19, %20 : vector<8x256xf32>
    %c0_18 = arith.constant 0 : index
    %c0_19 = arith.constant 0 : index
    %22 = vector.load %arg8[%c0_18, %c0_19] : memref<256x32xf32, #tpu.memory_space<vmem>>, vector<256x32xf32>
    %cst_20 = arith.constant dense<0.000000e+00> : vector<8x32xf32>
    %23 = tpu.matmul %21, %22, %cst_20 {dimension_numbers = #tpu.dot_dimension_numbers<[1], [0], [0], [1], [0, 0, 1, 1], [], []>} : vector<8x256xf32>, vector<256x32xf32>, vector<8x32xf32> -> vector<8x32xf32>
    %c0_21 = arith.constant 0 : index
    %c0_22 = arith.constant 0 : index
    %24 = vector.load %arg9[%c0_21, %c0_22] : memref<1x32xf32, #tpu.memory_space<vmem>>, vector<1x32xf32>
    %25 = vector.broadcast %24 : vector<1x32xf32> to vector<8x32xf32>
    %26 = arith.addf %23, %25 : vector<8x32xf32>
    %c0_23 = arith.constant 0 : index
    %c0_24 = arith.constant 0 : index
    %27 = vector.load %arg10[%c0_23, %c0_24] : memref<8x32xf32, #tpu.memory_space<vmem>>, vector<8x32xf32>
    tpu.vector_store %arg10[%c0_23, %c0_24], %26 {strides = array<i32>} : memref<8x32xf32, #tpu.memory_space<vmem>>, vector<8x32xf32>,
    return
  }
  func.func @transform_0(%arg0: i32) -> (i32, i32) {
    %c0_i32 = arith.constant 0 : i32
    %c0_i32_0 = arith.constant 0 : i32
    return %arg0, %c0_i32 : i32, i32
  }
  func.func @transform_1(%arg0: i32) -> (i32, i32) {
    %c0_i32 = arith.constant 0 : i32
    %c0_i32_0 = arith.constant 0 : i32
    %c0_i32_1 = arith.constant 0 : i32
    return %c0_i32, %c0_i32_0 : i32, i32
  }
  func.func @transform_2(%arg0: i32) -> (i32, i32) {
    %c0_i32 = arith.constant 0 : i32
    %c0_i32_0 = arith.constant 0 : i32
    %c0_i32_1 = arith.constant 0 : i32
    return %c0_i32, %c0_i32_0 : i32, i32
  }
  func.func @transform_3(%arg0: i32) -> (i32, i32) {
    %c0_i32 = arith.constant 0 : i32
    %c0_i32_0 = arith.constant 0 : i32
    %c0_i32_1 = arith.constant 0 : i32
    return %c0_i32, %c0_i32_0 : i32, i32
  }
  func.func @transform_4(%arg0: i32) -> (i32, i32) {
    %c0_i32 = arith.constant 0 : i32
    %c0_i32_0 = arith.constant 0 : i32
    %c0_i32_1 = arith.constant 0 : i32
    return %c0_i32, %c0_i32_0 : i32, i32
  }
  func.func @transform_5(%arg0: i32) -> (i32, i32) {
    %c0_i32 = arith.constant 0 : i32
    %c0_i32_0 = arith.constant 0 : i32
    %c0_i32_1 = arith.constant 0 : i32
    return %c0_i32, %c0_i32_0 : i32, i32
  }
  func.func @transform_6(%arg0: i32) -> (i32, i32) {
    %c0_i32 = arith.constant 0 : i32
    %c0_i32_0 = arith.constant 0 : i32
    %c0_i32_1 = arith.constant 0 : i32
    return %c0_i32, %c0_i32_0 : i32, i32
  }
  func.func @transform_7(%arg0: i32) -> (i32, i32) {
    %c0_i32 = arith.constant 0 : i32
    %c0_i32_0 = arith.constant 0 : i32
    %c0_i32_1 = arith.constant 0 : i32
    return %c0_i32, %c0_i32_0 : i32, i32
  }
  func.func @transform_8(%arg0: i32) -> (i32, i32) {
    %c0_i32 = arith.constant 0 : i32
    %c0_i32_0 = arith.constant 0 : i32
    %c0_i32_1 = arith.constant 0 : i32
    return %c0_i32, %c0_i32_0 : i32, i32
  }
  func.func @transform_9(%arg0: i32) -> (i32, i32) {
    %c0_i32 = arith.constant 0 : i32
    %c0_i32_0 = arith.constant 0 : i32
    return %arg0, %c0_i32 : i32, i32
  }
}

</mosaic_0001>

<llo_original>
// kernel: tpu_custom_call.1
$region0: #{tpu_custom_call.1}
  #allocation0 [shape = 'u32[]', space=smem, size = 0x4, offset = 0x4, fixed_abs, tag = 'smem constant byte address 0x4 - core index']
  #allocation1 [shape = 'u32[144,128]{1,0:T(1,128)}', space=vmem, size = 0x12000, scoped, tag = 'internal scratch']
  %s0 = inlined_call_operand.vmem [shape: f32[16,16], index: 0, kind: input, shape index: {}]
  %s1 = inlined_call_operand.vmem [shape: f32[16,128], index: 1, kind: input, shape index: {}]
  %s2 = inlined_call_operand.vmem [shape: f32[1,128], index: 2, kind: input, shape index: {}]
  %s3 = inlined_call_operand.hbm [shape: f32[128,128], index: 3, kind: input, shape index: {}]
  %s4 = inlined_call_operand.vmem [shape: f32[1,128], index: 4, kind: input, shape index: {}]
  %s5 = inlined_call_operand.vmem [shape: f32[128,256], index: 5, kind: input, shape index: {}]
  %s6 = inlined_call_operand.vmem [shape: f32[1,256], index: 6, kind: input, shape index: {}]
  %s7 = inlined_call_operand.vmem [shape: f32[256,32], index: 7, kind: input, shape index: {}]
  %s8 = inlined_call_operand.vmem [shape: f32[1,32], index: 8, kind: input, shape index: {}]
  %s9 = inlined_call_operand.hbm [shape: f32[16,32], index: 9, kind: output, shape index: {}]
  %s10 = sld [smem:[#allocation0]]
  $region73: #{tpu_custom_call.1} parent=0
    _
  %s12 = ssub.s32 1, %s10
  %s13 = scalar_select 0, %s12, %s10
  $region1: #{tpu_custom_call.1} parent=0
    #allocation2 [shape = 'u8[65536]{0}', space=vmem, size = 0x10000, scoped, tag = 'input window, operand 3, single buffered']
    #allocation3 [shape = 's32[2]{0}', space=sflag, size = 0x8, scoped, tag = 'scoped memory for tpu_custom_call.1']
    #allocation4 [shape = 's32[2]{0}', space=sflag, size = 0x8, scoped, tag = 'scoped memory for tpu_custom_call.1']
    #allocation5 [shape = 'u8[8192]{0}', space=vmem, size = 0x2000, scoped, tag = 'output window, operand 0']
    %14 = vsyncpa [#allocation3], 0
    %15 = vsyncpa [#allocation4], 0
    %s16 = scalar_lea.sflag [#allocation4], 1
    %17 = vsyncpa %s16, 0
    loop: start=0, step=1, limit=4
    $region2: #{tpu_custom_call.1} parent=1 // loop_pre_header
      _
    $region3: #{tpu_custom_call.1} parent=1 // loop_header
      %s19 = sphi 0, %s23
      %p20 = scmp.ge.s32.totalorder %s19, 4
      %s29 = sphi 0, %s31
      %s32 = sphi 0, %s29
      %s33 = sphi 0, %s32
      %s49 = sphi 0, %s33
      %s53 = sphi 0, %s53
      %s55 = sphi 0, %s53
      %s56 = sphi 0, %s55
      %s70 = sphi 0, %s56
      %s74 = sphi 0, %s74
      %s76 = sphi 0, %s74
      %s77 = sphi 0, %s76
      %s91 = sphi 0, %s77
      %s95 = sphi 0, %s95
      %s97 = sphi 0, %s95
      %s98 = sphi 0, %s97
      %s112 = sphi 0, %s98
      %s116 = sphi 0, %s116
      %s118 = sphi 0, %s116
      %s119 = sphi 0, %s118
      %s133 = sphi 0, %s119
      %s137 = sphi 0, %s137
      %s139 = sphi 0, %s137
      %s140 = sphi 0, %s139
      %s154 = sphi 0, %s140
      %s158 = sphi 0, %s158
      %s160 = sphi 0, %s158
      %s161 = sphi 0, %s160
      %s175 = sphi 0, %s161
      %s179 = sphi 0, %s179
      %s181 = sphi 0, %s179
      %s182 = sphi 0, %s181
      %s196 = sphi 0, %s182
      %s200 = sphi 0, %s200
      %s202 = sphi 0, %s200
      %s203 = sphi 0, %s202
      %s217 = sphi 0, %s203
      %s223 = sphi 0, %s225
      %s226 = sphi 0, %s223
      %s227 = sphi 0, %s226
      %s243 = sphi 0, %s227
    $region4: #{tpu_custom_call.1} parent=1 // loop_header_branch
      %22 = sbr.rel (%p20) target = $region8
    $region5: #{tpu_custom_call.1} parent=1 // loop_body
      %s24 = ssub.s32 %s19, 1
      %s25 = ssub.s32 %s19, 2
      %s26 = sadd.s32 %s19, 1
      %s27 = ssub.s32 %s19, %s26
      %p28 = scmp.eq.s32.totalorder %s27, 0
      %s30 = sadd.s32 %s29, 1
      %s31 = scalar_select %p28, %s29, %s30
      %p34 = pneg %p28
      %p35 = scmp.eq.s32.totalorder %s19, 1
      %p36 = por %p34, %p35
      %p37 = scmp.ne.s32.totalorder %s29, %s32
      %p38 = scmp.eq.s32.totalorder %s19, 0
      %p39 = por %p37, %p38
      %p40 = scmp.ne.s32.totalorder %s29, %s32
      %p41 = scmp.eq.s32.totalorder %s24, 1
      %p42 = por %p40, %p41
      %p43 = scmp.ne.s32.totalorder %s32, %s33
      %p44 = scmp.eq.s32.totalorder %s24, 0
      %p45 = por %p43, %p44
      %p46 = scmp.ne.s32.totalorder %s32, %s33
      %p47 = scmp.eq.s32.totalorder %s25, 1
      %p48 = por %p46, %p47
      %p50 = scmp.ne.s32.totalorder %s33, %s49
      %p51 = scmp.eq.s32.totalorder %s25, 0
      %p52 = por %p50, %p51
      %s54 = sadd.s32 %s53, 1
      %p57 = scmp.eq.s32.totalorder %s19, 1
      %p58 = scmp.ne.s32.totalorder %s53, %s55
      %p59 = scmp.eq.s32.totalorder %s19, 0
      %p60 = por %p58, %p59
      %p61 = scmp.ne.s32.totalorder %s53, %s55
      %p62 = scmp.eq.s32.totalorder %s24, 1
      %p63 = por %p61, %p62
      %p64 = scmp.ne.s32.totalorder %s55, %s56
      %p65 = scmp.eq.s32.totalorder %s24, 0
      %p66 = por %p64, %p65
      %p67 = scmp.ne.s32.totalorder %s55, %s56
      %p68 = scmp.eq.s32.totalorder %s25, 1
      %p69 = por %p67, %p68
      %p71 = scmp.ne.s32.totalorder %s56, %s70
      %p72 = scmp.eq.s32.totalorder %s25, 0
      %p73 = por %p71, %p72
      %s75 = sadd.s32 %s74, 1
      %p78 = scmp.eq.s32.totalorder %s19, 1
      %p79 = scmp.ne.s32.totalorder %s74, %s76
      %p80 = scmp.eq.s32.totalorder %s19, 0
      %p81 = por %p79, %p80
      %p82 = scmp.ne.s32.totalorder %s74, %s76
      %p83 = scmp.eq.s32.totalorder %s24, 1
      %p84 = por %p82, %p83
      %p85 = scmp.ne.s32.totalorder %s76, %s77
      %p86 = scmp.eq.s32.totalorder %s24, 0
      %p87 = por %p85, %p86
      %p88 = scmp.ne.s32.totalorder %s76, %s77
      %p89 = scmp.eq.s32.totalorder %s25, 1
      %p90 = por %p88, %p89
      %p92 = scmp.ne.s32.totalorder %s77, %s91
      %p93 = scmp.eq.s32.totalorder %s25, 0
      %p94 = por %p92, %p93
      %s96 = sadd.s32 %s95, 1
      %p99 = scmp.eq.s32.totalorder %s19, 1
      %p100 = scmp.ne.s32.totalorder %s95, %s97
      %p101 = scmp.eq.s32.totalorder %s19, 0
      %p102 = por %p100, %p101
      %p103 = scmp.ne.s32.totalorder %s95, %s97
      %p104 = scmp.eq.s32.totalorder %s24, 1
      %p105 = por %p103, %p104
      %p106 = scmp.ne.s32.totalorder %s97, %s98
      %p107 = scmp.eq.s32.totalorder %s24, 0
      %p108 = por %p106, %p107
      %p109 = scmp.ne.s32.totalorder %s97, %s98
      %p110 = scmp.eq.s32.totalorder %s25, 1
      %p111 = por %p109, %p110
      %p113 = scmp.ne.s32.totalorder %s98, %s112
      %p114 = scmp.eq.s32.totalorder %s25, 0
      %p115 = por %p113, %p114
      %s117 = sadd.s32 %s116, 1
      %p120 = scmp.eq.s32.totalorder %s19, 1
      %p121 = scmp.ne.s32.totalorder %s116, %s118
      %p122 = scmp.eq.s32.totalorder %s19, 0
      %p123 = por %p121, %p122
      %p124 = scmp.ne.s32.totalorder %s116, %s118
      %p125 = scmp.eq.s32.totalorder %s24, 1
      %p126 = por %p124, %p125
      %p127 = scmp.ne.s32.totalorder %s118, %s119
      %p128 = scmp.eq.s32.totalorder %s24, 0
      %p129 = por %p127, %p128
      %p130 = scmp.ne.s32.totalorder %s118, %s119
      %p131 = scmp.eq.s32.totalorder %s25, 1
      %p132 = por %p130, %p131
      %p134 = scmp.ne.s32.totalorder %s119, %s133
      %p135 = scmp.eq.s32.totalorder %s25, 0
      %p136 = por %p134, %p135
      %s138 = sadd.s32 %s137, 1
      %p141 = scmp.eq.s32.totalorder %s19, 1
      %p142 = scmp.ne.s32.totalorder %s137, %s139
      %p143 = scmp.eq.s32.totalorder %s19, 0
      %p144 = por %p142, %p143
      %p145 = scmp.ne.s32.totalorder %s137, %s139
      %p146 = scmp.eq.s32.totalorder %s24, 1
      %p147 = por %p145, %p146
      %p148 = scmp.ne.s32.totalorder %s139, %s140
      %p149 = scmp.eq.s32.totalorder %s24, 0
      %p150 = por %p148, %p149
      %p151 = scmp.ne.s32.totalorder %s139, %s140
      %p152 = scmp.eq.s32.totalorder %s25, 1
      %p153 = por %p151, %p152
      %p155 = scmp.ne.s32.totalorder %s140, %s154
      %p156 = scmp.eq.s32.totalorder %s25, 0
      %p157 = por %p155, %p156
      %s159 = sadd.s32 %s158, 1
      %p162 = scmp.eq.s32.totalorder %s19, 1
      %p163 = scmp.ne.s32.totalorder %s158, %s160
      %p164 = scmp.eq.s32.totalorder %s19, 0
      %p165 = por %p163, %p164
      %p166 = scmp.ne.s32.totalorder %s158, %s160
      %p167 = scmp.eq.s32.totalorder %s24, 1
      %p168 = por %p166, %p167
      %p169 = scmp.ne.s32.totalorder %s160, %s161
      %p170 = scmp.eq.s32.totalorder %s24, 0
      %p171 = por %p169, %p170
      %p172 = scmp.ne.s32.totalorder %s160, %s161
      %p173 = scmp.eq.s32.totalorder %s25, 1
      %p174 = por %p172, %p173
      %p176 = scmp.ne.s32.totalorder %s161, %s175
      %p177 = scmp.eq.s32.totalorder %s25, 0
      %p178 = por %p176, %p177
      %s180 = sadd.s32 %s179, 1
      %p183 = scmp.eq.s32.totalorder %s19, 1
      %p184 = scmp.ne.s32.totalorder %s179, %s181
      %p185 = scmp.eq.s32.totalorder %s19, 0
      %p186 = por %p184, %p185
      %p187 = scmp.ne.s32.totalorder %s179, %s181
      %p188 = scmp.eq.s32.totalorder %s24, 1
      %p189 = por %p187, %p188
      %p190 = scmp.ne.s32.totalorder %s181, %s182
      %p191 = scmp.eq.s32.totalorder %s24, 0
      %p192 = por %p190, %p191
      %p193 = scmp.ne.s32.totalorder %s181, %s182
      %p194 = scmp.eq.s32.totalorder %s25, 1
      %p195 = por %p193, %p194
      %p197 = scmp.ne.s32.totalorder %s182, %s196
      %p198 = scmp.eq.s32.totalorder %s25, 0
      %p199 = por %p197, %p198
      %s201 = sadd.s32 %s200, 1
      %p204 = scmp.eq.s32.totalorder %s19, 1
      %p205 = scmp.ne.s32.totalorder %s200, %s202
      %p206 = scmp.eq.s32.totalorder %s19, 0
      %p207 = por %p205, %p206
      %p208 = scmp.ne.s32.totalorder %s200, %s202
      %p209 = scmp.eq.s32.totalorder %s24, 1
      %p210 = por %p208, %p209
      %p211 = scmp.ne.s32.totalorder %s202, %s203
      %p212 = scmp.eq.s32.totalorder %s24, 0
      %p213 = por %p211, %p212
      %p214 = scmp.ne.s32.totalorder %s202, %s203
      %p215 = scmp.eq.s32.totalorder %s25, 1
      %p216 = por %p214, %p215
      %p218 = scmp.ne.s32.totalorder %s203, %s217
      %p219 = scmp.eq.s32.totalorder %s25, 0
      %p220 = por %p218, %p219
      %s221 = ssub.s32 %s19, %s26
      %p222 = scmp.eq.s32.totalorder %s221, 0
      %s224 = sadd.s32 %s223, 1
      %s225 = scalar_select %p222, %s223, %s224
      %p228 = pneg %p222
      %p229 = scmp.eq.s32.totalorder %s19, 1
      %p230 = por %p228, %p229
      %p231 = scmp.ne.s32.totalorder %s223, %s226
      %p232 = scmp.eq.s32.totalorder %s19, 0
      %p233 = por %p231, %p232
      %p234 = scmp.ne.s32.totalorder %s223, %s226
      %p235 = scmp.eq.s32.totalorder %s24, 1
      %p236 = por %p234, %p235
      %p237 = scmp.ne.s32.totalorder %s226, %s227
      %p238 = scmp.eq.s32.totalorder %s24, 0
      %p239 = por %p237, %p238
      %p240 = scmp.ne.s32.totalorder %s226, %s227
      %p241 = scmp.eq.s32.totalorder %s25, 1
      %p242 = por %p240, %p241
      %p244 = scmp.ne.s32.totalorder %s227, %s243
      %p245 = scmp.eq.s32.totalorder %s25, 0
      %p246 = por %p244, %p245
      %p247 = scmp.le.s32.totalorder 1, %s19
      %p248 = scmp.lt.s32.totalorder %s19, 3
      %p249 = pnand %p247, %p248
      %p250 = pneg %p249
      // Predicated region
      $region9: #{tpu_custom_call.1} parent=5 // pred_check
        _
      $region10: #{tpu_custom_call.1} parent=5 // pred_check_branch
        %252 = sbr.rel (%p249) target = $region12
      $region11: #{tpu_custom_call.1} parent=5 // pred_region
        %s253 = ssub.s32 %s19, 1
        // Predicated region
        $region13: #{tpu_custom_call.1} parent=11 // pred_check
          %p254 = pneg %p66
        $region14: #{tpu_custom_call.1} parent=11 // pred_check_branch
          %256 = sbr.rel (%p254) target = $region16
        $region15: #{tpu_custom_call.1} parent=11 // pred_region
          _
        $region16: #{tpu_custom_call.1} parent=11 // pred_fallthru
          _
        // Predicated region
        $region17: #{tpu_custom_call.1} parent=11 // pred_check
          %p257 = pneg %p87
        $region18: #{tpu_custom_call.1} parent=11 // pred_check_branch
          %259 = sbr.rel (%p257) target = $region20
        $region19: #{tpu_custom_call.1} parent=11 // pred_region
          _
        $region20: #{tpu_custom_call.1} parent=11 // pred_fallthru
          _
        // Predicated region
        $region21: #{tpu_custom_call.1} parent=11 // pred_check
          %p260 = pneg %p108
        $region22: #{tpu_custom_call.1} parent=11 // pred_check_branch
          %262 = sbr.rel (%p260) target = $region24
        $region23: #{tpu_custom_call.1} parent=11 // pred_region
          %s264 = ssub.s32 2048, 2048
          %265 = vsyncadd [#allocation3], %s264
          %s266 = sshll.u32 [#allocation2], 4
          %s267 = int_to_ptr.vmem [resolvable:$true] %s266
          %272 = dma.hbm_to_vmem [thread:$0]  %s3, 2048, %s267, [#allocation3], 128, 128, 8
        $region24: #{tpu_custom_call.1} parent=11 // pred_fallthru
          _
        // Predicated region
        $region25: #{tpu_custom_call.1} parent=11 // pred_check
          %p273 = pneg %p129
        $region26: #{tpu_custom_call.1} parent=11 // pred_check_branch
          %275 = sbr.rel (%p273) target = $region28
        $region27: #{tpu_custom_call.1} parent=11 // pred_region
          _
        $region28: #{tpu_custom_call.1} parent=11 // pred_fallthru
          _
        // Predicated region
        $region29: #{tpu_custom_call.1} parent=11 // pred_check
          %p276 = pneg %p150
        $region30: #{tpu_custom_call.1} parent=11 // pred_check_branch
          %278 = sbr.rel (%p276) target = $region32
        $region31: #{tpu_custom_call.1} parent=11 // pred_region
          _
        $region32: #{tpu_custom_call.1} parent=11 // pred_fallthru
          _
        // Predicated region
        $region33: #{tpu_custom_call.1} parent=11 // pred_check
          %p279 = pneg %p171
        $region34: #{tpu_custom_call.1} parent=11 // pred_check_branch
          %281 = sbr.rel (%p279) target = $region36
        $region35: #{tpu_custom_call.1} parent=11 // pred_region
          _
        $region36: #{tpu_custom_call.1} parent=11 // pred_fallthru
          _
        // Predicated region
        $region37: #{tpu_custom_call.1} parent=11 // pred_check
          %p282 = pneg %p192
        $region38: #{tpu_custom_call.1} parent=11 // pred_check_branch
          %284 = sbr.rel (%p282) target = $region40
        $region39: #{tpu_custom_call.1} parent=11 // pred_region
          _
        $region40: #{tpu_custom_call.1} parent=11 // pred_fallthru
          _
        // Predicated region
        $region41: #{tpu_custom_call.1} parent=11 // pred_check
          %p285 = pneg %p213
        $region42: #{tpu_custom_call.1} parent=11 // pred_check_branch
          %287 = sbr.rel (%p285) target = $region44
        $region43: #{tpu_custom_call.1} parent=11 // pred_region
          _
        $region44: #{tpu_custom_call.1} parent=11 // pred_fallthru
          _
      $region12: #{tpu_custom_call.1} parent=5 // pred_fallthru
        _
      %p288 = scmp.lt.s32.totalorder %s19, 2
      // Predicated region
      $region45: #{tpu_custom_call.1} parent=5 // pred_check
        %p289 = pneg %p288
      $region46: #{tpu_custom_call.1} parent=5 // pred_check_branch
        %291 = sbr.rel (%p289) target = $region48
      $region47: #{tpu_custom_call.1} parent=5 // pred_region
        // Predicated region
        $region49: #{tpu_custom_call.1} parent=47 // pred_check
          %p292 = pneg %p39
        $region50: #{tpu_custom_call.1} parent=47 // pred_check_branch
          %294 = sbr.rel (%p292) target = $region52
        $region51: #{tpu_custom_call.1} parent=47 // pred_region
          %p295 = scmp.lt.s32.totalorder %s19, 1
          %s296 = scalar_select %p295, %s19, 1
          %s297 = smul.addr %s296, 8
          %s298 = scalar_lea.vmem %s0, %s297
        $region52: #{tpu_custom_call.1} parent=47 // pred_fallthru
          _
      $region48: #{tpu_custom_call.1} parent=5 // pred_fallthru
        _
      %p299 = scmp.le.s32.totalorder 1, %s19
      %p300 = scmp.lt.s32.totalorder %s19, 3
      %p301 = pnand %p299, %p300
      %p302 = pneg %p301
      // Predicated region
      $region53: #{tpu_custom_call.1} parent=5 // pred_check
        _
      $region54: #{tpu_custom_call.1} parent=5 // pred_check_branch
        %304 = sbr.rel (%p301) target = $region56
      $region55: #{tpu_custom_call.1} parent=5 // pred_region
        %s305 = ssub.s32 %s19, 1
        // Predicated region
        $region57: #{tpu_custom_call.1} parent=55 // pred_check
          %p306 = pneg %p108
        $region58: #{tpu_custom_call.1} parent=55 // pred_check_branch
          %308 = sbr.rel (%p306) target = $region60
        $region59: #{tpu_custom_call.1} parent=55 // pred_region
          %309 = dma.done [#allocation3], 2048
        $region60: #{tpu_custom_call.1} parent=55 // pred_fallthru
          _
        %p310 = scmp.lt.s32.totalorder %s24, 1
        %s311 = scalar_select %p310, %s24, 1
        %s312 = smul.addr %s311, 8
        %s313 = scalar_lea.vmem %s0, %s312
        %p314 = pneg %p45
        %p315 = pneg %p42
        %p316 = pneg %p66
        %p317 = pneg %p63
        %p318 = pneg %p87
        %p319 = pneg %p84
        %p320 = pneg %p108
        %p321 = pneg %p105
        %p322 = pneg %p129
        %p323 = pneg %p126
        %p324 = pneg %p150
        %p325 = pneg %p147
        %p326 = pneg %p171
        %p327 = pneg %p168
        %p328 = pneg %p192
        %p329 = pneg %p189
        %p330 = pneg %p213
        %p331 = pneg %p210
        %p332 = pneg %p239
        %p333 = pneg %p236
        %s334 = sand.u32 %s226, 1
        %s335 = scalar_lea.sflag [#allocation4], %s334
        %s336 = sand.u32 %s226, 1
        %s337 = smul.addr %s336, 8
        %s338 = scalar_lea.vmem [#allocation5], %s337
        %p339 = scmp.lt.s32.totalorder %s24, 1
        %s340 = scalar_select %p339, %s24, 1
        %s341 = smul.addr %s340, 8
        %s342 = scalar_lea.vmem %s0, %s341
        %v343 = vld [vmem:[%s342] sm:$0xff]
        %v344 = vld [vmem:[%s1] sm:$0xff]
        %v345 = vld [vmem:[%s1 + $0x8] sm:$0xff]
        %v346 = vld [vmem:[%s2] sm:$0x1]
        %v348 = vlaneseq
        %v349 = vshrl.u32 %v348, 7
        %v350 = vsub.s32 0, %v349
        %v351 = vrot.slane %v346, %v350
        %vm353 = vcmask 130048
        %v355 = vsel %vm353, %v343, 0
        %357 = vmatprep.subr.mxu0 0.0
        %358 = vmatpush1.msra.mxu0 %v344
        %359 = vmatprep.subr.mxu0 0.0
        %360 = vmatpush1.msra.mxu0 %v345
        %361 = vmatprep.subr.mxu0 0.0
        %362 = vmatpush1.msra.mxu0 0.0
        %363 = vmatprep.subr.mxu0 0.0
        %364 = vmatpush1.msra.mxu0 0.0
        %365 = vmatprep.subr.mxu0 0.0
        %366 = vmatpush1.msra.mxu0 0.0
        %367 = vmatprep.subr.mxu0 0.0
        %368 = vmatpush1.msra.mxu0 0.0
        %369 = vmatprep.subr.mxu0 0.0
        %370 = vmatpush1.msra.mxu0 0.0
        %371 = vmatprep.subr.mxu0 0.0
        %372 = vmatpush1.msra.mxu0 0.0
        %373 = vmatprep.subr.mxu0 0.0
        %374 = vmatpush1.msra.mxu0 0.0
        %375 = vmatprep.subr.mxu0 0.0
        %376 = vmatpush1.msra.mxu0 0.0
        %377 = vmatprep.subr.mxu0 0.0
        %378 = vmatpush1.msra.mxu0 0.0
        %379 = vmatprep.subr.mxu0 0.0
        %380 = vmatpush1.msra.mxu0 0.0
        %381 = vmatprep.subr.mxu0 0.0
        %382 = vmatpush1.msra.mxu0 0.0
        %383 = vmatprep.subr.mxu0 0.0
        %384 = vmatpush1.msra.mxu0 0.0
        %385 = vmatprep.subr.mxu0 0.0
        %386 = vmatpush1.msra.mxu0 0.0
        %387 = vmatprep.subr.mxu0 0.0
        %388 = vmatpush1.msra.mxu0 0.0
        %389 = vmatprep.subr.mxu0 0.0
        %390 = vmatpush1.msra.mxu0 0.0
        %391 = vmatprep.subr.mxu0 0.0
        %392 = vmatpush1.msra.mxu0 0.0
        %393 = vmatprep.subr.mxu0 0.0
        %394 = vmatpush1.msra.mxu0 0.0
        %395 = vmatprep.subr.mxu0 0.0
        %396 = vmatpush1.msra.mxu0 0.0
        %397 = vmatprep.subr.mxu0 0.0
        %398 = vmatpush1.msra.mxu0 0.0
        %399 = vmatprep.subr.mxu0 0.0
        %400 = vmatpush1.msra.mxu0 0.0
        %401 = vmatprep.subr.mxu0 0.0
        %402 = vmatpush1.msra.mxu0 0.0
        %403 = vmatprep.subr.mxu0 0.0
        %404 = vmatpush1.msra.mxu0 0.0
        %405 = vmatprep.subr.mxu0 0.0
        %406 = vmatpush1.msra.mxu0 0.0
        %407 = vmatprep.subr.mxu0 0.0
        %408 = vmatpush1.msra.mxu0 0.0
        %409 = vmatprep.subr.mxu0 0.0
        %410 = vmatpush1.msra.mxu0 0.0
        %411 = vmatprep.subr.mxu0 0.0
        %412 = vmatpush1.msra.mxu0 0.0
        %413 = vmatprep.subr.mxu0 0.0
        %414 = vmatpush1.msra.mxu0 0.0
        %415 = vmatprep.subr.mxu0 0.0
        %416 = vmatpush1.msra.mxu0 0.0
        %417 = vmatprep.subr.mxu0 0.0
        %418 = vmatpush1.msra.mxu0 0.0
        %419 = vmatprep.subr.mxu0 0.0
        %420 = vmatpush1.msra.mxu0 0.0
        %421 = vmatprep.mubr.f32.mxu0 0.0
        %422 = vmatmul.mubr.f32.gmra.mrb[0].mxu0 %v355
        %v423 = vpop.f32.mrb[0].mxu0
        %v424 = vadd.f32 %v351, %v423
        %v425 = vpop.f32.mrb[0].mxu0
        %426 = vdwg.mxu0
        %v427 = vmax.f32 %v424, 0.0
        %v428 = vld [vmem:[#allocation2] sm:$0xff]
        %v429 = vld [vmem:[#allocation2 + $0x8] sm:$0xff]
        %v430 = vld [vmem:[#allocation2 + $0x10] sm:$0xff]
        %v431 = vld [vmem:[#allocation2 + $0x18] sm:$0xff]
        %v432 = vld [vmem:[#allocation2 + $0x20] sm:$0xff]
        %v433 = vld [vmem:[#allocation2 + $0x28] sm:$0xff]
        %v434 = vld [vmem:[#allocation2 + $0x30] sm:$0xff]
        %v435 = vld [vmem:[#allocation2 + $0x38] sm:$0xff]
        %v436 = vld [vmem:[#allocation2 + $0x40] sm:$0xff]
        %v437 = vld [vmem:[#allocation2 + $0x48] sm:$0xff]
        %v438 = vld [vmem:[#allocation2 + $0x50] sm:$0xff]
        %v439 = vld [vmem:[#allocation2 + $0x58] sm:$0xff]
        %v440 = vld [vmem:[#allocation2 + $0x60] sm:$0xff]
        %v441 = vld [vmem:[#allocation2 + $0x68] sm:$0xff]
        %v442 = vld [vmem:[#allocation2 + $0x70] sm:$0xff]
        %v443 = vld [vmem:[#allocation2 + $0x78] sm:$0xff]
        %v444 = vld [vmem:[%s4] sm:$0x1]
        %v446 = vlaneseq
        %v447 = vshrl.u32 %v446, 7
        %v448 = vsub.s32 0, %v447
        %v449 = vrot.slane %v444, %v448
        %451 = vmatprep.subr.mxu0 0.0
        %452 = vmatpush1.msra.mxu0 %v428
        %453 = vmatprep.subr.mxu0 0.0
        %454 = vmatpush1.msra.mxu0 %v429
        %455 = vmatprep.subr.mxu0 0.0
        %456 = vmatpush1.msra.mxu0 %v430
        %457 = vmatprep.subr.mxu0 0.0
        %458 = vmatpush1.msra.mxu0 %v431
        %459 = vmatprep.subr.mxu0 0.0
        %460 = vmatpush1.msra.mxu0 %v432
        %461 = vmatprep.subr.mxu0 0.0
        %462 = vmatpush1.msra.mxu0 %v433
        %463 = vmatprep.subr.mxu0 0.0
        %464 = vmatpush1.msra.mxu0 %v434
        %465 = vmatprep.subr.mxu0 0.0
        %466 = vmatpush1.msra.mxu0 %v435
        %467 = vmatprep.subr.mxu0 0.0
        %468 = vmatpush1.msra.mxu0 %v436
        %469 = vmatprep.subr.mxu0 0.0
        %470 = vmatpush1.msra.mxu0 %v437
        %471 = vmatprep.subr.mxu0 0.0
        %472 = vmatpush1.msra.mxu0 %v438
        %473 = vmatprep.subr.mxu0 0.0
        %474 = vmatpush1.msra.mxu0 %v439
        %475 = vmatprep.subr.mxu0 0.0
        %476 = vmatpush1.msra.mxu0 %v440
        %477 = vmatprep.subr.mxu0 0.0
        %478 = vmatpush1.msra.mxu0 %v441
        %479 = vmatprep.subr.mxu0 0.0
        %480 = vmatpush1.msra.mxu0 %v442
        %481 = vmatprep.subr.mxu0 0.0
        %482 = vmatpush1.msra.mxu0 %v443
        %483 = vmatprep.subr.mxu0 0.0
        %484 = vmatpush1.msra.mxu0 0.0
        %485 = vmatprep.subr.mxu0 0.0
        %486 = vmatpush1.msra.mxu0 0.0
        %487 = vmatprep.subr.mxu0 0.0
        %488 = vmatpush1.msra.mxu0 0.0
        %489 = vmatprep.subr.mxu0 0.0
        %490 = vmatpush1.msra.mxu0 0.0
        %491 = vmatprep.subr.mxu0 0.0
        %492 = vmatpush1.msra.mxu0 0.0
        %493 = vmatprep.subr.mxu0 0.0
        %494 = vmatpush1.msra.mxu0 0.0
        %495 = vmatprep.subr.mxu0 0.0
        %496 = vmatpush1.msra.mxu0 0.0
        %497 = vmatprep.subr.mxu0 0.0
        %498 = vmatpush1.msra.mxu0 0.0
        %499 = vmatprep.subr.mxu0 0.0
        %500 = vmatpush1.msra.mxu0 0.0
        %501 = vmatprep.subr.mxu0 0.0
        %502 = vmatpush1.msra.mxu0 0.0
        %503 = vmatprep.subr.mxu0 0.0
        %504 = vmatpush1.msra.mxu0 0.0
        %505 = vmatprep.subr.mxu0 0.0
        %506 = vmatpush1.msra.mxu0 0.0
        %507 = vmatprep.subr.mxu0 0.0
        %508 = vmatpush1.msra.mxu0 0.0
        %509 = vmatprep.subr.mxu0 0.0
        %510 = vmatpush1.msra.mxu0 0.0
        %511 = vmatprep.subr.mxu0 0.0
        %512 = vmatpush1.msra.mxu0 0.0
        %513 = vmatprep.subr.mxu0 0.0
        %514 = vmatpush1.msra.mxu0 0.0
        %515 = vmatprep.mubr.f32.mxu0 0.0
        %516 = vmatmul.mubr.f32.gmra.mrb[0].mxu0 %v427
        %v517 = vpop.f32.mrb[0].mxu0
        %v518 = vadd.f32 %v449, %v517
        %v519 = vpop.f32.mrb[0].mxu0
        %520 = vdwg.mxu0
        %v521 = vmax.f32 %v518, 0.0
        %v522 = vld [vmem:[%s5] sm:$0xff]
        %v523 = vld [vmem:[%s5 + $0x8] sm:$0xff]
        %v524 = vld [vmem:[%s5 + $0x10] sm:$0xff]
        %v525 = vld [vmem:[%s5 + $0x18] sm:$0xff]
        %v526 = vld [vmem:[%s5 + $0x20] sm:$0xff]
        %v527 = vld [vmem:[%s5 + $0x28] sm:$0xff]
        %v528 = vld [vmem:[%s5 + $0x30] sm:$0xff]
        %v529 = vld [vmem:[%s5 + $0x38] sm:$0xff]
        %v530 = vld [vmem:[%s5 + $0x40] sm:$0xff]
        %v531 = vld [vmem:[%s5 + $0x48] sm:$0xff]
        %v532 = vld [vmem:[%s5 + $0x50] sm:$0xff]
        %v533 = vld [vmem:[%s5 + $0x58] sm:$0xff]
        %v534 = vld [vmem:[%s5 + $0x60] sm:$0xff]
        %v535 = vld [vmem:[%s5 + $0x68] sm:$0xff]
        %v536 = vld [vmem:[%s5 + $0x70] sm:$0xff]
        %v537 = vld [vmem:[%s5 + $0x78] sm:$0xff]
        %v538 = vld [vmem:[%s5 + $0x80] sm:$0xff]
        %v539 = vld [vmem:[%s5 + $0x88] sm:$0xff]
        %v540 = vld [vmem:[%s5 + $0x90] sm:$0xff]
        %v541 = vld [vmem:[%s5 + $0x98] sm:$0xff]
        %v542 = vld [vmem:[%s5 + $0xa0] sm:$0xff]
        %v543 = vld [vmem:[%s5 + $0xa8] sm:$0xff]
        %v544 = vld [vmem:[%s5 + $0xb0] sm:$0xff]
        %v545 = vld [vmem:[%s5 + $0xb8] sm:$0xff]
        %v546 = vld [vmem:[%s5 + $0xc0] sm:$0xff]
        %v547 = vld [vmem:[%s5 + $0xc8] sm:$0xff]
        %v548 = vld [vmem:[%s5 + $0xd0] sm:$0xff]
        %v549 = vld [vmem:[%s5 + $0xd8] sm:$0xff]
        %v550 = vld [vmem:[%s5 + $0xe0] sm:$0xff]
        %v551 = vld [vmem:[%s5 + $0xe8] sm:$0xff]
        %v552 = vld [vmem:[%s5 + $0xf0] sm:$0xff]
        %v553 = vld [vmem:[%s5 + $0xf8] sm:$0xff]
        %v554 = vld [vmem:[%s6] sm:$0x3]
        %v556 = vlaneseq
        %v557 = vshrl.u32 %v556, 7
        %v558 = vsub.s32 0, %v557
        %v559 = vrot.slane %v554, %v558
        %v560 = vlaneseq
        %v561 = vshrl.u32 %v560, 7
        %v562 = vsub.s32 1, %v561
        %v563 = vrot.slane %v554, %v562
        %566 = vmatprep.subr.mxu0 %v523
        %567 = vmatpush1.msra.mxu0 %v522
        %568 = vmatprep.subr.mxu0 %v525
        %569 = vmatpush1.msra.mxu0 %v524
        %570 = vmatprep.subr.mxu0 %v527
        %571 = vmatpush1.msra.mxu0 %v526
        %572 = vmatprep.subr.mxu0 %v529
        %573 = vmatpush1.msra.mxu0 %v528
        %574 = vmatprep.subr.mxu0 %v531
        %575 = vmatpush1.msra.mxu0 %v530
        %576 = vmatprep.subr.mxu0 %v533
        %577 = vmatpush1.msra.mxu0 %v532
        %578 = vmatprep.subr.mxu0 %v535
        %579 = vmatpush1.msra.mxu0 %v534
        %580 = vmatprep.subr.mxu0 %v537
        %581 = vmatpush1.msra.mxu0 %v536
        %582 = vmatprep.subr.mxu0 %v539
        %583 = vmatpush1.msra.mxu0 %v538
        %584 = vmatprep.subr.mxu0 %v541
        %585 = vmatpush1.msra.mxu0 %v540
        %586 = vmatprep.subr.mxu0 %v543
        %587 = vmatpush1.msra.mxu0 %v542
        %588 = vmatprep.subr.mxu0 %v545
        %589 = vmatpush1.msra.mxu0 %v544
        %590 = vmatprep.subr.mxu0 %v547
        %591 = vmatpush1.msra.mxu0 %v546
        %592 = vmatprep.subr.mxu0 %v549
        %593 = vmatpush1.msra.mxu0 %v548
        %594 = vmatprep.subr.mxu0 %v551
        %595 = vmatpush1.msra.mxu0 %v550
        %596 = vmatprep.subr.mxu0 %v553
        %597 = vmatpush1.msra.mxu0 %v552
        %598 = vmatprep.subr.mxu0 0.0
        %599 = vmatpush1.msra.mxu0 0.0
        %600 = vmatprep.subr.mxu0 0.0
        %601 = vmatpush1.msra.mxu0 0.0
        %602 = vmatprep.subr.mxu0 0.0
        %603 = vmatpush1.msra.mxu0 0.0
        %604 = vmatprep.subr.mxu0 0.0
        %605 = vmatpush1.msra.mxu0 0.0
        %606 = vmatprep.subr.mxu0 0.0
        %607 = vmatpush1.msra.mxu0 0.0
        %608 = vmatprep.subr.mxu0 0.0
        %609 = vmatpush1.msra.mxu0 0.0
        %610 = vmatprep.subr.mxu0 0.0
        %611 = vmatpush1.msra.mxu0 0.0
        %612 = vmatprep.subr.mxu0 0.0
        %613 = vmatpush1.msra.mxu0 0.0
        %614 = vmatprep.subr.mxu0 0.0
        %615 = vmatpush1.msra.mxu0 0.0
        %616 = vmatprep.subr.mxu0 0.0
        %617 = vmatpush1.msra.mxu0 0.0
        %618 = vmatprep.subr.mxu0 0.0
        %619 = vmatpush1.msra.mxu0 0.0
        %620 = vmatprep.subr.mxu0 0.0
        %621 = vmatpush1.msra.mxu0 0.0
        %622 = vmatprep.subr.mxu0 0.0
        %623 = vmatpush1.msra.mxu0 0.0
        %624 = vmatprep.subr.mxu0 0.0
        %625 = vmatpush1.msra.mxu0 0.0
        %626 = vmatprep.subr.mxu0 0.0
        %627 = vmatpush1.msra.mxu0 0.0
        %628 = vmatprep.subr.mxu0 0.0
        %629 = vmatpush1.msra.mxu0 0.0
        %630 = vmatprep.mubr.f32.mxu0 0.0
        %631 = vmatmul.mubr.f32.gmra.mrb[0].mxu0 %v521
        %v632 = vpop.f32.mrb[0].mxu0
        %v633 = vadd.f32 %v559, %v632
        %v634 = vpop.f32.mrb[0].mxu0
        %v635 = vadd.f32 %v563, %v634
        %636 = vdwg.mxu0
        %v637 = vmax.f32 %v633, 0.0
        %v638 = vmax.f32 %v635, 0.0
        %v639 = vld [vmem:[%s7] sm:$0xff]
        %v640 = vld [vmem:[%s7 + $0x8] sm:$0xff]
        %v641 = vld [vmem:[%s7 + $0x10] sm:$0xff]
        %v642 = vld [vmem:[%s7 + $0x18] sm:$0xff]
        %v643 = vld [vmem:[%s7 + $0x20] sm:$0xff]
        %v644 = vld [vmem:[%s7 + $0x28] sm:$0xff]
        %v645 = vld [vmem:[%s7 + $0x30] sm:$0xff]
        %v646 = vld [vmem:[%s7 + $0x38] sm:$0xff]
        %v647 = vld [vmem:[%s7 + $0x40] sm:$0xff]
        %v648 = vld [vmem:[%s7 + $0x48] sm:$0xff]
        %v649 = vld [vmem:[%s7 + $0x50] sm:$0xff]
        %v650 = vld [vmem:[%s7 + $0x58] sm:$0xff]
        %v651 = vld [vmem:[%s7 + $0x60] sm:$0xff]
        %v652 = vld [vmem:[%s7 + $0x68] sm:$0xff]
        %v653 = vld [vmem:[%s7 + $0x70] sm:$0xff]
        %v654 = vld [vmem:[%s7 + $0x78] sm:$0xff]
        %v655 = vld [vmem:[%s7 + $0x80] sm:$0xff]
        %v656 = vld [vmem:[%s7 + $0x88] sm:$0xff]
        %v657 = vld [vmem:[%s7 + $0x90] sm:$0xff]
        %v658 = vld [vmem:[%s7 + $0x98] sm:$0xff]
        %v659 = vld [vmem:[%s7 + $0xa0] sm:$0xff]
        %v660 = vld [vmem:[%s7 + $0xa8] sm:$0xff]
        %v661 = vld [vmem:[%s7 + $0xb0] sm:$0xff]
        %v662 = vld [vmem:[%s7 + $0xb8] sm:$0xff]
        %v663 = vld [vmem:[%s7 + $0xc0] sm:$0xff]
        %v664 = vld [vmem:[%s7 + $0xc8] sm:$0xff]
        %v665 = vld [vmem:[%s7 + $0xd0] sm:$0xff]
        %v666 = vld [vmem:[%s7 + $0xd8] sm:$0xff]
        %v667 = vld [vmem:[%s7 + $0xe0] sm:$0xff]
        %v668 = vld [vmem:[%s7 + $0xe8] sm:$0xff]
        %v669 = vld [vmem:[%s7 + $0xf0] sm:$0xff]
        %v670 = vld [vmem:[%s7 + $0xf8] sm:$0xff]
        %v671 = vld [vmem:[%s8] sm:$0x1]
        %v673 = vlaneseq
        %v674 = vshrl.u32 %v673, 7
        %v675 = vsub.s32 0, %v674
        %v676 = vrot.slane %v671, %v675
        %678 = vmatprep.subr.mxu0 0.0
        %679 = vmatpush1.msra.mxu0 %v639
        %680 = vmatprep.subr.mxu0 0.0
        %681 = vmatpush1.msra.mxu0 %v640
        %682 = vmatprep.subr.mxu0 0.0
        %683 = vmatpush1.msra.mxu0 %v641
        %684 = vmatprep.subr.mxu0 0.0
        %685 = vmatpush1.msra.mxu0 %v642
        %686 = vmatprep.subr.mxu0 0.0
        %687 = vmatpush1.msra.mxu0 %v643
        %688 = vmatprep.subr.mxu0 0.0
        %689 = vmatpush1.msra.mxu0 %v644
        %690 = vmatprep.subr.mxu0 0.0
        %691 = vmatpush1.msra.mxu0 %v645
        %692 = vmatprep.subr.mxu0 0.0
        %693 = vmatpush1.msra.mxu0 %v646
        %694 = vmatprep.subr.mxu0 0.0
        %695 = vmatpush1.msra.mxu0 %v647
        %696 = vmatprep.subr.mxu0 0.0
        %697 = vmatpush1.msra.mxu0 %v648
        %698 = vmatprep.subr.mxu0 0.0
        %699 = vmatpush1.msra.mxu0 %v649
        %700 = vmatprep.subr.mxu0 0.0
        %701 = vmatpush1.msra.mxu0 %v650
        %702 = vmatprep.subr.mxu0 0.0
        %703 = vmatpush1.msra.mxu0 %v651
        %704 = vmatprep.subr.mxu0 0.0
        %705 = vmatpush1.msra.mxu0 %v652
        %706 = vmatprep.subr.mxu0 0.0
        %707 = vmatpush1.msra.mxu0 %v653
        %708 = vmatprep.subr.mxu0 0.0
        %709 = vmatpush1.msra.mxu0 %v654
        %710 = vmatprep.subr.mxu0 0.0
        %711 = vmatpush1.msra.mxu0 %v655
        %712 = vmatprep.subr.mxu0 0.0
        %713 = vmatpush1.msra.mxu0 %v656
        %714 = vmatprep.subr.mxu0 0.0
        %715 = vmatpush1.msra.mxu0 %v657
        %716 = vmatprep.subr.mxu0 0.0
        %717 = vmatpush1.msra.mxu0 %v658
        %718 = vmatprep.subr.mxu0 0.0
        %719 = vmatpush1.msra.mxu0 %v659
        %720 = vmatprep.subr.mxu0 0.0
        %721 = vmatpush1.msra.mxu0 %v660
        %722 = vmatprep.subr.mxu0 0.0
        %723 = vmatpush1.msra.mxu0 %v661
        %724 = vmatprep.subr.mxu0 0.0
        %725 = vmatpush1.msra.mxu0 %v662
        %726 = vmatprep.subr.mxu0 0.0
        %727 = vmatpush1.msra.mxu0 %v663
        %728 = vmatprep.subr.mxu0 0.0
        %729 = vmatpush1.msra.mxu0 %v664
        %730 = vmatprep.subr.mxu0 0.0
        %731 = vmatpush1.msra.mxu0 %v665
        %732 = vmatprep.subr.mxu0 0.0
        %733 = vmatpush1.msra.mxu0 %v666
        %734 = vmatprep.subr.mxu0 0.0
        %735 = vmatpush1.msra.mxu0 %v667
        %736 = vmatprep.subr.mxu0 0.0
        %737 = vmatpush1.msra.mxu0 %v668
        %738 = vmatprep.subr.mxu0 0.0
        %739 = vmatpush1.msra.mxu0 %v669
        %740 = vmatprep.subr.mxu0 0.0
        %741 = vmatpush1.msra.mxu0 %v670
        %742 = vmatprep.mubr.f32.mxu0 %v638
        %743 = vmatmul.mubr.f32.gmra.mrb[0].mxu0 %v637
        %v744 = vpop.f32.mrb[0].mxu0
        %v745 = vadd.f32 %v676, %v744
        %v746 = vpop.f32.mrb[0].mxu0
        %747 = vdwg.mxu0
        %vm748 = vcmask 261120
        %749 = vst.msk [vmem:[%s338] sm:$0xff] %vm748, %v745
        %s750 = sand.u32 %s226, 1
        %s751 = scalar_lea.sflag [#allocation4], %s750
        %s752 = sand.u32 %s226, 1
        %s753 = smul.addr %s752, 8
        %s754 = scalar_lea.vmem [#allocation5], %s753
        // Predicated region
        $region61: #{tpu_custom_call.1} parent=55 // pred_check
          %p755 = pneg %p236
        $region62: #{tpu_custom_call.1} parent=55 // pred_check_branch
          %757 = sbr.rel (%p755) target = $region64
        $region63: #{tpu_custom_call.1} parent=55 // pred_region
          %s759 = ssub.s32 128, 128
          %760 = vsyncadd %s751, %s759
          %s761 = smul.addr %s24, 128
          %s762 = scalar_lea.hbm %s9, %s761
          %s764 = sshll.u32 %s754, 4
          %s765 = int_to_ptr.vmem [resolvable:$true] %s764
          %767 = dma.vmem_to_hbm [thread:$0]  %s765, 128, %s762, %s751
        $region64: #{tpu_custom_call.1} parent=55 // pred_fallthru
          _
      $region56: #{tpu_custom_call.1} parent=5 // pred_fallthru
        _
      %p768 = scmp.le.s32.totalorder 2, %s19
      // Predicated region
      $region65: #{tpu_custom_call.1} parent=5 // pred_check
        %p769 = pneg %p768
      $region66: #{tpu_custom_call.1} parent=5 // pred_check_branch
        %771 = sbr.rel (%p769) target = $region68
      $region67: #{tpu_custom_call.1} parent=5 // pred_region
        %s772 = ssub.s32 %s19, 2
        // Predicated region
        $region69: #{tpu_custom_call.1} parent=67 // pred_check
          %p773 = pneg %p242
        $region70: #{tpu_custom_call.1} parent=67 // pred_check_branch
          %775 = sbr.rel (%p773) target = $region72
        $region71: #{tpu_custom_call.1} parent=67 // pred_region
          %s776 = sand.u32 %s227, 1
          %s777 = scalar_lea.sflag [#allocation4], %s776
          %s778 = sand.u32 %s227, 1
          %s779 = smul.addr %s778, 8
          %s780 = scalar_lea.vmem [#allocation5], %s779
          %781 = dma.done %s777, 128
        $region72: #{tpu_custom_call.1} parent=67 // pred_fallthru
          _
      $region68: #{tpu_custom_call.1} parent=5 // pred_fallthru
        _
    $region6: #{tpu_custom_call.1} parent=1 // loop_footer
      %s23 = sadd.s32 1, %s19
    $region7: #{tpu_custom_call.1} parent=1 // loop_footer_branch
      %18 = sbr.rel target = $region3
    $region8: #{tpu_custom_call.1} parent=1 // loop_exit
      _
    %782 = vsyncpa [#allocation3], 1
    %s783 = scalar_lea.sflag [#allocation3], 1
    %784 = vsyncpa %s783, 1
    %785 = vsyncpa [#allocation4], 1
    %s786 = scalar_lea.sflag [#allocation4], 1
    %787 = vsyncpa %s786, 1

</llo_original>
